<compile_context>
chip_gen: v5e
topology: v5e:2x2
jax: 0.10.0
libtpu: 0.0.40
codegen_flags: <defaults>
</compile_context>

<pallas_src>
import jax
import jax.numpy as jnp
from jax.experimental import pallas as pl
from jax.experimental.pallas import tpu as pltpu

NUM_LEAVES = 8  # leaves of BasicTreeGen(): counts 1,2,4,5,8,9,11,12


def tree_mlp_kernel(x_ref, w1_ref, b1_ref, w2_ref, b2_ref, o_ref):
    """Fused forward: ReLU(x @ W1_flat + b1_flat) * W2_flat summed over lanes."""
    x = x_ref[...]          # (B, D)
    w1 = w1_ref[...]        # (D, L*D)  all leaf first-layer weights, lane-dense
    b1 = b1_ref[...]        # (1, L*D)
    w2 = w2_ref[...]        # (1, L*D)  all leaf second-layer weights, lane-major
    b2 = b2_ref[0]          # scalar: sum_i b2[i]

    # Single MXU matmul covering all 8 leaf Linear(dim, dim) layers at once.
    h = jnp.dot(x, w1, preferred_element_type=jnp.float32) + b1   # (B, L*D)
    h = jnp.maximum(h, 0.0)                                       # ReLU

    # Second Linear(dim, 1) of every leaf + sum over leaves (tree combine with
    # addition): lane-major elementwise multiply (VPU) + lane reduce (XLU).
    y = jnp.sum(h * w2, axis=-1, keepdims=True) + b2              # (B, 1)
    o_ref[...] = y


def trainable_tree_forward(x, w1, b1, w2, b2):
    """x: (B, D); w1: (L, D, D) stored (in,out); b1: (L, 1, D); w2: (L, D, 1); b2: (L, 1, 1)."""
    B, D = x.shape
    L = w1.shape[0]

    # Fuse the leaf axis into lane-dense slabs (done once, outside the kernel).
    w1_flat = jnp.transpose(w1, (1, 0, 2)).reshape(D, L * D)   # [in, leaf*D + out]
    b1_flat = b1.reshape(1, L * D)
    w2_flat = w2.reshape(1, L * D)                             # [leaf*D + d]
    b2_sum = jnp.sum(b2).reshape(1)                            # scalar (SMEM)

    flops = 2 * B * D * (L * D) + 3 * B * (L * D)
    bytes_accessed = 4 * (B * D + D * L * D + 2 * L * D + 1 + B)

    return pl.pallas_call(
        tree_mlp_kernel,
        out_shape=jax.ShapeDtypeStruct((B, 1), jnp.float32),
        in_specs=[
            pl.BlockSpec(memory_space=pltpu.MemorySpace.VMEM),   # x
            pl.BlockSpec(memory_space=pltpu.MemorySpace.VMEM),   # W1_flat
            pl.BlockSpec(memory_space=pltpu.MemorySpace.VMEM),   # b1_flat
            pl.BlockSpec(memory_space=pltpu.MemorySpace.VMEM),   # W2_flat (lane-major)
            pl.BlockSpec(memory_space=pltpu.MemorySpace.SMEM),   # b2_sum scalar
        ],
        out_specs=pl.BlockSpec(memory_space=pltpu.MemorySpace.VMEM),
        cost_estimate=pl.CostEstimate(
            flops=flops, transcendentals=0, bytes_accessed=bytes_accessed),
    )(x, w1_flat, b1_flat, w2_flat, b2_sum)


def reference_forward(x, w1, b1, w2, b2):
    """Pure-JAX reference: sum over leaves of Linear->ReLU->Linear."""
    out = jnp.zeros((x.shape[0], 1), jnp.float32)
    for i in range(w1.shape[0]):
        h = jnp.maximum(x @ w1[i] + b1[i], 0.0)
        out = out + (h @ w2[i] + b2[i])
    return out


if __name__ == "__main__":
    B, D = 8, 32  # small shapes: batch=8, hidden dim=32

    key = jax.random.PRNGKey(0)
    kx, k1, k2, k3, k4 = jax.random.split(key, 5)

    x = jax.random.normal(kx, (B, D), dtype=jnp.float32)

    # Deterministic parameter init (PyTorch-Linear-like uniform scale).
    s1 = 1.0 / jnp.sqrt(D)
    w1 = jax.random.uniform(k1, (NUM_LEAVES, D, D), jnp.float32, -s1, s1)
    b1 = jax.random.uniform(k2, (NUM_LEAVES, 1, D), jnp.float32, -s1, s1)
    w2 = jax.random.uniform(k3, (NUM_LEAVES, D, 1), jnp.float32, -s1, s1)
    b2 = jax.random.uniform(k4, (NUM_LEAVES, 1, 1), jnp.float32, -s1, s1)

    out = trainable_tree_forward(x, w1, b1, w2, b2)
    out = jax.block_until_ready(out)

    ref = reference_forward(x, w1, b1, w2, b2)
    assert out.shape == (B, 1)
    assert jnp.allclose(out, ref, atol=1e-4, rtol=1e-4), "mismatch vs reference"

    print("KERNEL_OK")
</pallas_src>

<mosaic_0001>
module attributes {stable_mosaic.version = 11 : i64} {
  func.func @tree_mlp_kernel(%arg0: memref<8x32xf32, #tpu.memory_space<vmem>>, %arg1: memref<32x256xf32, #tpu.memory_space<vmem>>, %arg2: memref<1x256xf32, #tpu.memory_space<vmem>>, %arg3: memref<1x256xf32, #tpu.memory_space<vmem>>, %arg4: memref<1xf32, #tpu.memory_space<smem>>, %arg5: memref<8x1xf32, #tpu.memory_space<vmem>>) attributes {dimension_semantics = [], scalar_prefetch = 0 : i64, scratch_operands = 0 : i64, tpu.core_type = #tpu.core_type<tc>} {
    %c0 = arith.constant 0 : index
    %c0_0 = arith.constant 0 : index
    %0 = vector.load %arg0[%c0, %c0_0] : memref<8x32xf32, #tpu.memory_space<vmem>>, vector<8x32xf32>
    %c0_1 = arith.constant 0 : index
    %c0_2 = arith.constant 0 : index
    %1 = vector.load %arg1[%c0_1, %c0_2] : memref<32x256xf32, #tpu.memory_space<vmem>>, vector<32x256xf32>
    %c0_3 = arith.constant 0 : index
    %c0_4 = arith.constant 0 : index
    %2 = vector.load %arg2[%c0_3, %c0_4] : memref<1x256xf32, #tpu.memory_space<vmem>>, vector<1x256xf32>
    %c0_5 = arith.constant 0 : index
    %c0_6 = arith.constant 0 : index
    %3 = vector.load %arg3[%c0_5, %c0_6] : memref<1x256xf32, #tpu.memory_space<vmem>>, vector<1x256xf32>
    %c0_7 = arith.constant 0 : index
    %4 = memref.load %arg4[%c0_7] : memref<1xf32, #tpu.memory_space<smem>>
    %cst = arith.constant dense<0.000000e+00> : vector<8x256xf32>
    %5 = tpu.matmul %0, %1, %cst {dimension_numbers = #tpu.dot_dimension_numbers<[1], [0], [0], [1], [0, 0, 1, 1], [], []>} : vector<8x32xf32>, vector<32x256xf32>, vector<8x256xf32> -> vector<8x256xf32>
    %6 = vector.broadcast %2 : vector<1x256xf32> to vector<8x256xf32>
    %7 = arith.addf %5, %6 : vector<8x256xf32>
    %cst_8 = arith.constant 0.000000e+00 : f32
    %8 = vector.broadcast %cst_8 : f32 to vector<8x256xf32>
    %9 = arith.maximumf %7, %8 : vector<8x256xf32>
    %10 = vector.broadcast %3 : vector<1x256xf32> to vector<8x256xf32>
    %11 = arith.mulf %9, %10 : vector<8x256xf32>
    %cst_9 = arith.constant dense<0.000000e+00> : vector<8xf32>
    %12 = vector.multi_reduction <add>, %11, %cst_9 [1] : vector<8x256xf32> to vector<8xf32>
    %13 = vector.shape_cast %12 : vector<8xf32> to vector<8x1xf32>
    %14 = vector.broadcast %4 : f32 to vector<8x1xf32>
    %15 = arith.addf %13, %14 : vector<8x1xf32>
    %c0_10 = arith.constant 0 : index
    %c0_11 = arith.constant 0 : index
    %16 = vector.load %arg5[%c0_10, %c0_11] : memref<8x1xf32, #tpu.memory_space<vmem>>, vector<8x1xf32>
    tpu.vector_store %arg5[%c0_10, %c0_11], %15 {strides = array<i32>} : memref<8x1xf32, #tpu.memory_space<vmem>>, vector<8x1xf32>,
    return
  }
}

</mosaic_0001>

<llo_original>
// kernel: tpu_custom_call.1
$region0: #{tpu_custom_call.1}
  #allocation0 [shape = 'u32[]', space=smem, size = 0x4, offset = 0x4, fixed_abs, tag = 'smem constant byte address 0x4 - core index']
  #allocation1 [shape = 'u32[72,128]{1,0:T(1,128)}', space=vmem, size = 0x9000, scoped, tag = 'internal scratch']
  #allocation2 [shape = 'f32[1]{0:T(128)S(6)}', space=smem, size = 0x200, scoped, tag = 'scoped memory for tpu_custom_call.1']
  %s0 = inlined_call_operand.hbm [shape: f32[8,32], index: 0, kind: input, shape index: {}]
  %s1 = inlined_call_operand.hbm [shape: f32[32,256], index: 1, kind: input, shape index: {}]
  %s2 = inlined_call_operand.vmem [shape: f32[1,256], index: 2, kind: input, shape index: {}]
  %s3 = inlined_call_operand.vmem [shape: f32[1,256], index: 3, kind: input, shape index: {}]
  %s4 = inlined_call_operand.<no memory space> [shape: f32[1], index: 4, kind: input, shape index: {}]
  %s5 = inlined_call_operand.vmem [shape: f32[8,1], index: 5, kind: output, shape index: {}]
  %s6 = sld [smem:[#allocation0]]
  $region38: #{tpu_custom_call.1} parent=0
    _
  %s8 = ssub.s32 1, %s6
  %s9 = scalar_select 0, %s8, %s6
  %10 = sst [smem:[#allocation2]] %s4
  $region1: #{tpu_custom_call.1} parent=0
    #allocation3 [shape = 'u8[4096]{0}', space=vmem, size = 0x1000, scoped, tag = 'input window, operand 0, single buffered']
    #allocation4 [shape = 's32[1]{0}', space=sflag, size = 0x4, scoped, tag = 'scoped memory for tpu_custom_call.1']
    #allocation5 [shape = 'u8[32768]{0}', space=vmem, size = 0x8000, scoped, tag = 'input window, operand 1, single buffered']
    #allocation6 [shape = 's32[1]{0}', space=sflag, size = 0x4, scoped, tag = 'scoped memory for tpu_custom_call.1']
    %11 = vsyncpa [#allocation4], 0
    %12 = vsyncpa [#allocation6], 0
    // Predicated region
    $region2: #{tpu_custom_call.1} parent=1 // pred_check
      _
    $region3: #{tpu_custom_call.1} parent=1 // pred_check_branch
      %14 = sbr.rel (0) target = $region5
    $region4: #{tpu_custom_call.1} parent=1 // pred_region
      %16 = vsyncadd [#allocation4], 0
      %s18 = sshll.u32 %s0, 4
      %s19 = int_to_ptr.hbm [resolvable:$true] %s18
      %s20 = sshll.u32 [#allocation3], 4
      %s21 = int_to_ptr.vmem [resolvable:$true] %s20
      %23 = dma.hbm_to_vmem [thread:$0]  %s19, 128, %s21, [#allocation4]
    $region5: #{tpu_custom_call.1} parent=1 // pred_fallthru
      _
    // Predicated region
    $region6: #{tpu_custom_call.1} parent=1 // pred_check
      _
    $region7: #{tpu_custom_call.1} parent=1 // pred_check_branch
      %25 = sbr.rel (0) target = $region9
    $region8: #{tpu_custom_call.1} parent=1 // pred_region
      %27 = vsyncadd [#allocation6], 0
      %s28 = sshll.u32 %s1, 4
      %s29 = int_to_ptr.hbm [resolvable:$true] %s28
      %s30 = sshll.u32 [#allocation5], 4
      %s31 = int_to_ptr.vmem [resolvable:$true] %s30
      %36 = dma.hbm_to_vmem [thread:$0]  %s29, 1024, %s31, [#allocation6], 256, 256, 16
    $region9: #{tpu_custom_call.1} parent=1 // pred_fallthru
      _
    // Predicated region
    $region10: #{tpu_custom_call.1} parent=1 // pred_check
      _
    $region11: #{tpu_custom_call.1} parent=1 // pred_check_branch
      %38 = sbr.rel (0) target = $region13
    $region12: #{tpu_custom_call.1} parent=1 // pred_region
      _
    $region13: #{tpu_custom_call.1} parent=1 // pred_fallthru
      _
    // Predicated region
    $region14: #{tpu_custom_call.1} parent=1 // pred_check
      _
    $region15: #{tpu_custom_call.1} parent=1 // pred_check_branch
      %40 = sbr.rel (0) target = $region17
    $region16: #{tpu_custom_call.1} parent=1 // pred_region
      _
    $region17: #{tpu_custom_call.1} parent=1 // pred_fallthru
      _
    // Predicated region
    $region18: #{tpu_custom_call.1} parent=1 // pred_check
      _
    $region19: #{tpu_custom_call.1} parent=1 // pred_check_branch
      %42 = sbr.rel (0) target = $region21
    $region20: #{tpu_custom_call.1} parent=1 // pred_region
      _
    $region21: #{tpu_custom_call.1} parent=1 // pred_fallthru
      _
    // Predicated region
    $region22: #{tpu_custom_call.1} parent=1 // pred_check
      _
    $region23: #{tpu_custom_call.1} parent=1 // pred_check_branch
      %44 = sbr.rel (0) target = $region25
    $region24: #{tpu_custom_call.1} parent=1 // pred_region
      %46 = dma.done [#allocation4], 128
    $region25: #{tpu_custom_call.1} parent=1 // pred_fallthru
      _
    // Predicated region
    $region26: #{tpu_custom_call.1} parent=1 // pred_check
      _
    $region27: #{tpu_custom_call.1} parent=1 // pred_check_branch
      %48 = sbr.rel (0) target = $region29
    $region28: #{tpu_custom_call.1} parent=1 // pred_region
      %50 = dma.done [#allocation6], 1024
    $region29: #{tpu_custom_call.1} parent=1 // pred_fallthru
      _
    %v51 = vld [vmem:[#allocation3] sm:$0xff]
    %v52 = vld [vmem:[#allocation5] sm:$0xff]
    %v53 = vld [vmem:[#allocation5 + $0x8] sm:$0xff]
    %v54 = vld [vmem:[#allocation5 + $0x10] sm:$0xff]
    %v55 = vld [vmem:[#allocation5 + $0x18] sm:$0xff]
    %v56 = vld [vmem:[#allocation5 + $0x20] sm:$0xff]
    %v57 = vld [vmem:[#allocation5 + $0x28] sm:$0xff]
    %v58 = vld [vmem:[#allocation5 + $0x30] sm:$0xff]
    %v59 = vld [vmem:[#allocation5 + $0x38] sm:$0xff]
    %v60 = vld [vmem:[%s2] sm:$0x3]
    %v61 = vld [vmem:[%s3] sm:$0x3]
    %s62 = sld [smem:[#allocation2]]
    %v64 = vperm.slane %v60, 0
    %v65 = vperm.slane %v60, 1
    %vm68 = vcmask 261120
    %v70 = vsel %vm68, %v51, 0
    %72 = vmatpush.msra.mxu0 0.0
    %73 = vmatpush.msra.mxu0 0.0
    %74 = vmatpush.msra.mxu0 0.0
    %75 = vmatpush.msra.mxu0 0.0
    %76 = vmatpush.msra.mxu0 0.0
    %77 = vmatpush.msra.mxu0 0.0
    %78 = vmatpush.msra.mxu0 0.0
    %79 = vmatpush.msra.mxu0 0.0
    %80 = vmatpush.msra.mxu0 0.0
    %81 = vmatpush.msra.mxu0 0.0
    %82 = vmatpush.msra.mxu0 0.0
    %83 = vmatpush.msra.mxu0 0.0
    %84 = vmatpush.msra.mxu0 %v58
    %85 = vmatpush.msra.mxu0 %v56
    %86 = vmatpush.msra.mxu0 %v54
    %87 = vmatpush.msra.mxu0 %v52
    %88 = vmatmul.f32.gmra.mxu0 %v70
    %v89 = vpop.f32.mrf.mxu0
    %v90 = vadd.f32 %v64, %v89
    %91 = vdwg.mxu0
    %92 = vmatpush.msra.mxu0 0.0
    %93 = vmatpush.msra.mxu0 0.0
    %94 = vmatpush.msra.mxu0 0.0
    %95 = vmatpush.msra.mxu0 0.0
    %96 = vmatpush.msra.mxu0 0.0
    %97 = vmatpush.msra.mxu0 0.0
    %98 = vmatpush.msra.mxu0 0.0
    %99 = vmatpush.msra.mxu0 0.0
    %100 = vmatpush.msra.mxu0 0.0
    %101 = vmatpush.msra.mxu0 0.0
    %102 = vmatpush.msra.mxu0 0.0
    %103 = vmatpush.msra.mxu0 0.0
    %104 = vmatpush.msra.mxu0 %v59
    %105 = vmatpush.msra.mxu0 %v57
    %106 = vmatpush.msra.mxu0 %v55
    %107 = vmatpush.msra.mxu0 %v53
    %108 = vmatmul.f32.gmra.mxu0 %v70
    %v109 = vpop.f32.mrf.mxu0
    %v110 = vadd.f32 %v65, %v109
    %111 = vdwg.mxu0
    %v112 = vmax.f32 %v90, 0.0
    %v113 = vmax.f32 %v110, 0.0
    %v115 = vperm.slane %v61, 0
    %v116 = vperm.slane %v61, 1
    %v119 = vmul.f32 %v112, %v115
    %v120 = vmul.f32 %v113, %v116
    %v121 = vadd.f32 %v119, %v120
    %122 = vadd.xlane.f32.xlu0 %v121
    %v123 = vpop.xlane.xlu0 %122
    %v124 = vstv %s62
    %v125 = vadd.f32 %v123, %v124
    %vm126 = vcmask 7168
    %127 = vst.msk [vmem:[%s5] sm:$0xff] %vm126, %v125
    // Predicated region
    $region30: #{tpu_custom_call.1} parent=1 // pred_check
      _
    $region31: #{tpu_custom_call.1} parent=1 // pred_check_branch
      %129 = sbr.rel (0) target = $region33
    $region32: #{tpu_custom_call.1} parent=1 // pred_region
      _
    $region33: #{tpu_custom_call.1} parent=1 // pred_fallthru
      _
    // Predicated region
    $region34: #{tpu_custom_call.1} parent=1 // pred_check
      _
    $region35: #{tpu_custom_call.1} parent=1 // pred_check_branch
      %131 = sbr.rel (0) target = $region37
    $region36: #{tpu_custom_call.1} parent=1 // pred_region
      _
    $region37: #{tpu_custom_call.1} parent=1 // pred_fallthru
      _
    %132 = vsyncpa [#allocation4], 1
    %133 = vsyncpa [#allocation6], 1

</llo_original>
